<compile_context>
chip_gen: v6e
topology: v6e:2x2x1
jax: 0.10.0
libtpu: 0.0.40
codegen_flags: <defaults>
</compile_context>

<pallas_src>
import functools

import jax
import jax.numpy as jnp
from jax.experimental import pallas as pl
from jax.experimental.pallas import tpu as pltpu


def _patch_expand_kernel(x_ref, w_ref, g_ref, b_ref, o_ref, *, eps: float):
    # x_ref: (TR, dim)          TR = TBH * W token rows (row = one input token)
    # w_ref: (dim, 2*dim)       expand weight (transpose of torch Linear weight)
    # g_ref: (1, half)          LayerNorm gamma
    # b_ref: (1, half)          LayerNorm beta
    # o_ref: (TBH, 2, W, dim)   output laid out as (b*h, p1, w, (p2 c))
    tbh, _, w_sp, _ = o_ref.shape
    half = g_ref.shape[-1]

    # MXU matmul in the stored dtype (f32 or bf16), accumulate in f32.
    y = jnp.dot(x_ref[...], w_ref[...], preferred_element_type=jnp.float32)

    gamma = g_ref[...].astype(jnp.float32)   # (1, half)
    beta = b_ref[...].astype(jnp.float32)    # (1, half)

    # Static unroll over the 4 channel quarters = (p1, p2) shuffle positions.
    for q in range(4):
        p1, p2 = q // 2, q % 2
        yq = y[:, q * half:(q + 1) * half]                 # (TR, half)
        mu = jnp.mean(yq, axis=-1, keepdims=True)          # (TR, 1)
        d = yq - mu
        var = jnp.mean(d * d, axis=-1, keepdims=True)      # (TR, 1)
        a = jax.lax.rsqrt(var + eps) * gamma               # (TR, half)
        yn = d * a + beta                                  # fused scale+shift
        # Direct store into the pixel-shuffled position of this output block.
        # Reshape (TR, half) -> (TBH, W, half) is a pure reinterpretation when
        # W is a multiple of the sublane tile (true for typical Swin shapes).
        o_ref[:, p1, :, p2 * half:(p2 + 1) * half] = (
            yn.reshape(tbh, w_sp, half).astype(o_ref.dtype))


def _sublane_multiple(dtype) -> int:
    itemsize = jnp.dtype(dtype).itemsize
    return {1: 32, 2: 16}.get(itemsize, 8)


def _pick_row_tile(bh: int, w: int, sub: int, target_rows: int) -> int:
    """Pick TBH (rows of (b,h) pairs per tile): a divisor of bh such that
    TBH*W <= target_rows, TBH*W is sublane-aligned, preferring >=2 grid steps
    (megacore on v7x). Falls back to the full extent for tiny inputs."""
    divs = [d for d in range(1, bh + 1) if bh % d == 0]
    valid = [d for d in divs if (d * w) % sub == 0 or d == bh]
    cands = [d for d in valid if d * w <= target_rows and bh // d >= 2]
    if not cands:
        cands = [d for d in valid if d * w <= target_rows]
    if not cands:
        cands = [min(valid)]
    return max(cands)


def patch_expand(x, w_expand, ln_gamma, ln_beta, input_resolution, *,
                 eps: float = 1e-5, target_tile_rows: int = 256):
    """x: (B, H*W, dim) -> (B, 4*H*W, dim//2)   (PatchExpand, dim_scale == 2)."""
    H, W = input_resolution
    B, L, dim = x.shape
    assert L == H * W, "input feature has wrong size"
    half = dim // 2
    two_dim = 2 * dim
    assert w_expand.shape == (dim, two_dim)
    assert ln_gamma.shape[-1] == half and ln_beta.shape[-1] == half

    BH = B * H
    rows = BH * W
    tbh = _pick_row_tile(BH, W, _sublane_multiple(x.dtype), target_tile_rows)
    tile_rows = tbh * W

    x_rows = x.reshape(rows, dim)
    g2 = ln_gamma.reshape(1, half)
    b2 = ln_beta.reshape(1, half)

    out4 = pl.pallas_call(
        functools.partial(_patch_expand_kernel, eps=eps),
        out_shape=jax.ShapeDtypeStruct((BH, 2, W, dim), x.dtype),
        grid_spec=pltpu.PrefetchScalarGridSpec(
            num_scalar_prefetch=0,
            grid=(BH // tbh,),
            in_specs=[
                pl.BlockSpec((tile_rows, dim), lambda i: (i, 0)),
                pl.BlockSpec((dim, two_dim), lambda i: (0, 0)),  # fetched once
                pl.BlockSpec((1, half), lambda i: (0, 0)),
                pl.BlockSpec((1, half), lambda i: (0, 0)),
            ],
            out_specs=pl.BlockSpec((tbh, 2, W, dim), lambda i: (i, 0, 0, 0)),
        ),
        compiler_params=pltpu.CompilerParams(
            dimension_semantics=("parallel",),
            vmem_limit_bytes=48 * 1024 * 1024,
        ),
    )(x_rows, w_expand, g2, b2)

    # Free reshapes only (no transpose): (BH,2,W,dim) -> (B,2H,2W,half) -> (B,4HW,half)
    out = out4.reshape(B, H, 2, W, 2, half)
    out = out.reshape(B, 2 * H, 2 * W, half)
    return out.reshape(B, 4 * H * W, half)


def _reference(x, w_expand, ln_gamma, ln_beta, input_resolution, eps=1e-5):
    """Pure-JAX (f32) reference mirroring the PyTorch forward."""
    H, W = input_resolution
    B, L, dim = x.shape
    y = jnp.dot(x.astype(jnp.float32), w_expand.astype(jnp.float32))
    C = y.shape[-1]
    y = y.reshape(B, H, W, 2, 2, C // 4)
    y = y.transpose(0, 1, 3, 2, 4, 5).reshape(B, 2 * H, 2 * W, C // 4)
    y = y.reshape(B, -1, C // 4)
    mu = jnp.mean(y, axis=-1, keepdims=True)
    var = jnp.mean((y - mu) ** 2, axis=-1, keepdims=True)
    yn = (y - mu) / jnp.sqrt(var + eps)
    return yn * ln_gamma.astype(jnp.float32) + ln_beta.astype(jnp.float32)


if __name__ == "__main__":
    # Small shapes consistent with the module: B=2, H=W=8 (L=64), dim=32.
    B, H, W, dim = 2, 8, 8, 32
    half = dim // 2

    key = jax.random.PRNGKey(0)
    kx, kw, kg, kb = jax.random.split(key, 4)

    x = jax.random.normal(kx, (B, H * W, dim), dtype=jnp.float32)
    # torch Linear weight is (2*dim, dim); we store its transpose (dim, 2*dim).
    w_expand = jax.random.normal(kw, (dim, 2 * dim), dtype=jnp.float32) * 0.05
    ln_gamma = 1.0 + 0.1 * jax.random.normal(kg, (half,), dtype=jnp.float32)
    ln_beta = 0.1 * jax.random.normal(kb, (half,), dtype=jnp.float32)

    # f32 path: tight check against the reference.
    out = patch_expand(x, w_expand, ln_gamma, ln_beta, (H, W))
    out = jax.block_until_ready(out)
    ref = _reference(x, w_expand, ln_gamma, ln_beta, (H, W))
    assert out.shape == (B, 4 * H * W, half), out.shape
    assert jnp.allclose(out, ref, atol=1e-4, rtol=1e-4), "f32 mismatch vs reference"

    # bf16 I/O path (halves HBM traffic on memory-bound configs): loose check.
    xb = x.astype(jnp.bfloat16)
    wb = w_expand.astype(jnp.bfloat16)
    out_bf16 = patch_expand(xb, wb, ln_gamma, ln_beta, (H, W))
    out_bf16 = jax.block_until_ready(out_bf16)
    ref_bf16 = _reference(xb.astype(jnp.float32), wb.astype(jnp.float32),
                          ln_gamma, ln_beta, (H, W))
    assert jnp.allclose(out_bf16.astype(jnp.float32), ref_bf16,
                        atol=5e-2, rtol=5e-2), "bf16 mismatch vs reference"

    print("KERNEL_OK")
</pallas_src>

<mosaic_0001>
module attributes {stable_mosaic.version = 11 : i64} {
  func.func @_patch_expand_kernel(%arg0: i32, %arg1: memref<64x32xf32, #tpu.memory_space<vmem>>, %arg2: memref<32x64xf32, #tpu.memory_space<vmem>>, %arg3: memref<1x16xf32, #tpu.memory_space<vmem>>, %arg4: memref<1x16xf32, #tpu.memory_space<vmem>>, %arg5: memref<8x2x8x32xf32, #tpu.memory_space<vmem>>) attributes {dimension_semantics = [#tpu.dimension_semantics<parallel>], iteration_bounds = array<i64: 2>, scalar_prefetch = 0 : i64, scratch_operands = 0 : i64, tpu.core_type = #tpu.core_type<tc>, window_params = [{transform_indices = @transform_0, window_bounds = array<i64: 64, 32>}, {pipeline_mode = #tpu.pipeline_mode<synchronous>, transform_indices = @transform_1, window_bounds = array<i64: 32, 64>}, {pipeline_mode = #tpu.pipeline_mode<synchronous>, transform_indices = @transform_2, window_bounds = array<i64: 1, 16>}, {pipeline_mode = #tpu.pipeline_mode<synchronous>, transform_indices = @transform_3, window_bounds = array<i64: 1, 16>}, {transform_indices = @transform_4, window_bounds = array<i64: 8, 2, 8, 32>}]} {
    %c0 = arith.constant 0 : index
    %c0_0 = arith.constant 0 : index
    %0 = vector.load %arg1[%c0, %c0_0] : memref<64x32xf32, #tpu.memory_space<vmem>>, vector<64x32xf32>
    %c0_1 = arith.constant 0 : index
    %c0_2 = arith.constant 0 : index
    %1 = vector.load %arg2[%c0_1, %c0_2] : memref<32x64xf32, #tpu.memory_space<vmem>>, vector<32x64xf32>
    %cst = arith.constant dense<0.000000e+00> : vector<64x64xf32>
    %2 = tpu.matmul %0, %1, %cst {dimension_numbers = #tpu.dot_dimension_numbers<[1], [0], [0], [1], [0, 0, 1, 1], [], []>} : vector<64x32xf32>, vector<32x64xf32>, vector<64x64xf32> -> vector<64x64xf32>
    %c0_3 = arith.constant 0 : index
    %c0_4 = arith.constant 0 : index
    %3 = vector.load %arg3[%c0_3, %c0_4] : memref<1x16xf32, #tpu.memory_space<vmem>>, vector<1x16xf32>
    %c0_5 = arith.constant 0 : index
    %c0_6 = arith.constant 0 : index
    %4 = vector.load %arg4[%c0_5, %c0_6] : memref<1x16xf32, #tpu.memory_space<vmem>>, vector<1x16xf32>
    %5 = vector.extract_strided_slice %2 {offsets = [0, 0], sizes = [64, 16], strides = [1, 1]} : vector<64x64xf32> to vector<64x16xf32>
    %cst_7 = arith.constant dense<0.000000e+00> : vector<64xf32>
    %6 = vector.multi_reduction <add>, %5, %cst_7 [1] : vector<64x16xf32> to vector<64xf32>
    %7 = vector.shape_cast %6 : vector<64xf32> to vector<64x1xf32>
    %cst_8 = arith.constant 1.600000e+01 : f32
    %8 = vector.broadcast %cst_8 : f32 to vector<64x1xf32>
    %9 = arith.divf %7, %8 : vector<64x1xf32>
    %10 = vector.broadcast %9 : vector<64x1xf32> to vector<64x16xf32>
    %11 = arith.subf %5, %10 : vector<64x16xf32>
    %12 = arith.mulf %11, %11 : vector<64x16xf32>
    %cst_9 = arith.constant dense<0.000000e+00> : vector<64xf32>
    %13 = vector.multi_reduction <add>, %12, %cst_9 [1] : vector<64x16xf32> to vector<64xf32>
    %14 = vector.shape_cast %13 : vector<64xf32> to vector<64x1xf32>
    %cst_10 = arith.constant 1.600000e+01 : f32
    %15 = vector.broadcast %cst_10 : f32 to vector<64x1xf32>
    %16 = arith.divf %14, %15 : vector<64x1xf32>
    %cst_11 = arith.constant 9.99999974E-6 : f32
    %17 = vector.broadcast %cst_11 : f32 to vector<64x1xf32>
    %18 = arith.addf %16, %17 : vector<64x1xf32>
    %19 = math.rsqrt %18 : vector<64x1xf32>
    %20 = vector.broadcast %19 : vector<64x1xf32> to vector<64x16xf32>
    %21 = vector.broadcast %3 : vector<1x16xf32> to vector<64x16xf32>
    %22 = arith.mulf %20, %21 : vector<64x16xf32>
    %23 = arith.mulf %11, %22 : vector<64x16xf32>
    %24 = vector.broadcast %4 : vector<1x16xf32> to vector<64x16xf32>
    %25 = arith.addf %23, %24 : vector<64x16xf32>
    %26 = vector.shape_cast %25 : vector<64x16xf32> to vector<8x8x16xf32>
    %c0_12 = arith.constant 0 : index
    %c0_13 = arith.constant 0 : index
    %c0_14 = arith.constant 0 : index
    %c0_15 = arith.constant 0 : index
    %27 = vector.load %arg5[%c0_12, %c0_13, %c0_14, %c0_15] : memref<8x2x8x32xf32, #tpu.memory_space<vmem>>, vector<8x1x8x16xf32>
    %28 = vector.shape_cast %27 : vector<8x1x8x16xf32> to vector<8x8x16xf32>
    %29 = vector.shape_cast %26 : vector<8x8x16xf32> to vector<8x1x8x16xf32>
    tpu.vector_store %arg5[%c0_12, %c0_13, %c0_14, %c0_15], %29 {strides = array<i32>} : memref<8x2x8x32xf32, #tpu.memory_space<vmem>>, vector<8x1x8x16xf32>,
    %30 = vector.extract_strided_slice %2 {offsets = [0, 16], sizes = [64, 16], strides = [1, 1]} : vector<64x64xf32> to vector<64x16xf32>
    %cst_16 = arith.constant dense<0.000000e+00> : vector<64xf32>
    %31 = vector.multi_reduction <add>, %30, %cst_16 [1] : vector<64x16xf32> to vector<64xf32>
    %32 = vector.shape_cast %31 : vector<64xf32> to vector<64x1xf32>
    %cst_17 = arith.constant 1.600000e+01 : f32
    %33 = vector.broadcast %cst_17 : f32 to vector<64x1xf32>
    %34 = arith.divf %32, %33 : vector<64x1xf32>
    %35 = vector.broadcast %34 : vector<64x1xf32> to vector<64x16xf32>
    %36 = arith.subf %30, %35 : vector<64x16xf32>
    %37 = arith.mulf %36, %36 : vector<64x16xf32>
    %cst_18 = arith.constant dense<0.000000e+00> : vector<64xf32>
    %38 = vector.multi_reduction <add>, %37, %cst_18 [1] : vector<64x16xf32> to vector<64xf32>
    %39 = vector.shape_cast %38 : vector<64xf32> to vector<64x1xf32>
    %cst_19 = arith.constant 1.600000e+01 : f32
    %40 = vector.broadcast %cst_19 : f32 to vector<64x1xf32>
    %41 = arith.divf %39, %40 : vector<64x1xf32>
    %cst_20 = arith.constant 9.99999974E-6 : f32
    %42 = vector.broadcast %cst_20 : f32 to vector<64x1xf32>
    %43 = arith.addf %41, %42 : vector<64x1xf32>
    %44 = math.rsqrt %43 : vector<64x1xf32>
    %45 = vector.broadcast %44 : vector<64x1xf32> to vector<64x16xf32>
    %46 = vector.broadcast %3 : vector<1x16xf32> to vector<64x16xf32>
    %47 = arith.mulf %45, %46 : vector<64x16xf32>
    %48 = arith.mulf %36, %47 : vector<64x16xf32>
    %49 = vector.broadcast %4 : vector<1x16xf32> to vector<64x16xf32>
    %50 = arith.addf %48, %49 : vector<64x16xf32>
    %51 = vector.shape_cast %50 : vector<64x16xf32> to vector<8x8x16xf32>
    %c0_21 = arith.constant 0 : index
    %c0_22 = arith.constant 0 : index
    %c0_23 = arith.constant 0 : index
    %c16 = arith.constant 16 : index
    %52 = vector.load %arg5[%c0_21, %c0_22, %c0_23, %c16] : memref<8x2x8x32xf32, #tpu.memory_space<vmem>>, vector<8x1x8x16xf32>
    %53 = vector.shape_cast %52 : vector<8x1x8x16xf32> to vector<8x8x16xf32>
    %54 = vector.shape_cast %51 : vector<8x8x16xf32> to vector<8x1x8x16xf32>
    tpu.vector_store %arg5[%c0_21, %c0_22, %c0_23, %c16], %54 {strides = array<i32>} : memref<8x2x8x32xf32, #tpu.memory_space<vmem>>, vector<8x1x8x16xf32>,
    %55 = vector.extract_strided_slice %2 {offsets = [0, 32], sizes = [64, 16], strides = [1, 1]} : vector<64x64xf32> to vector<64x16xf32>
    %cst_24 = arith.constant dense<0.000000e+00> : vector<64xf32>
    %56 = vector.multi_reduction <add>, %55, %cst_24 [1] : vector<64x16xf32> to vector<64xf32>
    %57 = vector.shape_cast %56 : vector<64xf32> to vector<64x1xf32>
    %cst_25 = arith.constant 1.600000e+01 : f32
    %58 = vector.broadcast %cst_25 : f32 to vector<64x1xf32>
    %59 = arith.divf %57, %58 : vector<64x1xf32>
    %60 = vector.broadcast %59 : vector<64x1xf32> to vector<64x16xf32>
    %61 = arith.subf %55, %60 : vector<64x16xf32>
    %62 = arith.mulf %61, %61 : vector<64x16xf32>
    %cst_26 = arith.constant dense<0.000000e+00> : vector<64xf32>
    %63 = vector.multi_reduction <add>, %62, %cst_26 [1] : vector<64x16xf32> to vector<64xf32>
    %64 = vector.shape_cast %63 : vector<64xf32> to vector<64x1xf32>
    %cst_27 = arith.constant 1.600000e+01 : f32
    %65 = vector.broadcast %cst_27 : f32 to vector<64x1xf32>
    %66 = arith.divf %64, %65 : vector<64x1xf32>
    %cst_28 = arith.constant 9.99999974E-6 : f32
    %67 = vector.broadcast %cst_28 : f32 to vector<64x1xf32>
    %68 = arith.addf %66, %67 : vector<64x1xf32>
    %69 = math.rsqrt %68 : vector<64x1xf32>
    %70 = vector.broadcast %69 : vector<64x1xf32> to vector<64x16xf32>
    %71 = vector.broadcast %3 : vector<1x16xf32> to vector<64x16xf32>
    %72 = arith.mulf %70, %71 : vector<64x16xf32>
    %73 = arith.mulf %61, %72 : vector<64x16xf32>
    %74 = vector.broadcast %4 : vector<1x16xf32> to vector<64x16xf32>
    %75 = arith.addf %73, %74 : vector<64x16xf32>
    %76 = vector.shape_cast %75 : vector<64x16xf32> to vector<8x8x16xf32>
    %c0_29 = arith.constant 0 : index
    %c1 = arith.constant 1 : index
    %c0_30 = arith.constant 0 : index
    %c0_31 = arith.constant 0 : index
    %77 = vector.load %arg5[%c0_29, %c1, %c0_30, %c0_31] : memref<8x2x8x32xf32, #tpu.memory_space<vmem>>, vector<8x1x8x16xf32>
    %78 = vector.shape_cast %77 : vector<8x1x8x16xf32> to vector<8x8x16xf32>
    %79 = vector.shape_cast %76 : vector<8x8x16xf32> to vector<8x1x8x16xf32>
    tpu.vector_store %arg5[%c0_29, %c1, %c0_30, %c0_31], %79 {strides = array<i32>} : memref<8x2x8x32xf32, #tpu.memory_space<vmem>>, vector<8x1x8x16xf32>,
    %80 = vector.extract_strided_slice %2 {offsets = [0, 48], sizes = [64, 16], strides = [1, 1]} : vector<64x64xf32> to vector<64x16xf32>
    %cst_32 = arith.constant dense<0.000000e+00> : vector<64xf32>
    %81 = vector.multi_reduction <add>, %80, %cst_32 [1] : vector<64x16xf32> to vector<64xf32>
    %82 = vector.shape_cast %81 : vector<64xf32> to vector<64x1xf32>
    %cst_33 = arith.constant 1.600000e+01 : f32
    %83 = vector.broadcast %cst_33 : f32 to vector<64x1xf32>
    %84 = arith.divf %82, %83 : vector<64x1xf32>
    %85 = vector.broadcast %84 : vector<64x1xf32> to vector<64x16xf32>
    %86 = arith.subf %80, %85 : vector<64x16xf32>
    %87 = arith.mulf %86, %86 : vector<64x16xf32>
    %cst_34 = arith.constant dense<0.000000e+00> : vector<64xf32>
    %88 = vector.multi_reduction <add>, %87, %cst_34 [1] : vector<64x16xf32> to vector<64xf32>
    %89 = vector.shape_cast %88 : vector<64xf32> to vector<64x1xf32>
    %cst_35 = arith.constant 1.600000e+01 : f32
    %90 = vector.broadcast %cst_35 : f32 to vector<64x1xf32>
    %91 = arith.divf %89, %90 : vector<64x1xf32>
    %cst_36 = arith.constant 9.99999974E-6 : f32
    %92 = vector.broadcast %cst_36 : f32 to vector<64x1xf32>
    %93 = arith.addf %91, %92 : vector<64x1xf32>
    %94 = math.rsqrt %93 : vector<64x1xf32>
    %95 = vector.broadcast %94 : vector<64x1xf32> to vector<64x16xf32>
    %96 = vector.broadcast %3 : vector<1x16xf32> to vector<64x16xf32>
    %97 = arith.mulf %95, %96 : vector<64x16xf32>
    %98 = arith.mulf %86, %97 : vector<64x16xf32>
    %99 = vector.broadcast %4 : vector<1x16xf32> to vector<64x16xf32>
    %100 = arith.addf %98, %99 : vector<64x16xf32>
    %101 = vector.shape_cast %100 : vector<64x16xf32> to vector<8x8x16xf32>
    %c0_37 = arith.constant 0 : index
    %c1_38 = arith.constant 1 : index
    %c0_39 = arith.constant 0 : index
    %c16_40 = arith.constant 16 : index
    %102 = vector.load %arg5[%c0_37, %c1_38, %c0_39, %c16_40] : memref<8x2x8x32xf32, #tpu.memory_space<vmem>>, vector<8x1x8x16xf32>
    %103 = vector.shape_cast %102 : vector<8x1x8x16xf32> to vector<8x8x16xf32>
    %104 = vector.shape_cast %101 : vector<8x8x16xf32> to vector<8x1x8x16xf32>
    tpu.vector_store %arg5[%c0_37, %c1_38, %c0_39, %c16_40], %104 {strides = array<i32>} : memref<8x2x8x32xf32, #tpu.memory_space<vmem>>, vector<8x1x8x16xf32>,
    return
  }
  func.func @transform_0(%arg0: i32) -> (i32, i32) {
    %c0_i32 = arith.constant 0 : i32
    %c0_i32_0 = arith.constant 0 : i32
    return %arg0, %c0_i32 : i32, i32
  }
  func.func @transform_1(%arg0: i32) -> (i32, i32) {
    %c0_i32 = arith.constant 0 : i32
    %c0_i32_0 = arith.constant 0 : i32
    %c0_i32_1 = arith.constant 0 : i32
    return %c0_i32, %c0_i32_0 : i32, i32
  }
  func.func @transform_2(%arg0: i32) -> (i32, i32) {
    %c0_i32 = arith.constant 0 : i32
    %c0_i32_0 = arith.constant 0 : i32
    %c0_i32_1 = arith.constant 0 : i32
    return %c0_i32, %c0_i32_0 : i32, i32
  }
  func.func @transform_3(%arg0: i32) -> (i32, i32) {
    %c0_i32 = arith.constant 0 : i32
    %c0_i32_0 = arith.constant 0 : i32
    %c0_i32_1 = arith.constant 0 : i32
    return %c0_i32, %c0_i32_0 : i32, i32
  }
  func.func @transform_4(%arg0: i32) -> (i32, i32, i32, i32) {
    %c0_i32 = arith.constant 0 : i32
    %c0_i32_0 = arith.constant 0 : i32
    %c0_i32_1 = arith.constant 0 : i32
    %c0_i32_2 = arith.constant 0 : i32
    return %arg0, %c0_i32, %c0_i32_0, %c0_i32_1 : i32, i32, i32, i32
  }
}

</mosaic_0001>

<llo_original>
// kernel: tpu_custom_call.1
$region0: #{tpu_custom_call.1}
  #allocation0 [shape = 'u32[]', space=smem, size = 0x4, offset = 0x4, fixed_abs, tag = 'smem constant byte address 0x4 - core index']
  #allocation1 [shape = 'u32[144,128]{1,0:T(1,128)}', space=vmem, size = 0x12000, scoped, tag = 'internal scratch']
  %s0 = inlined_call_operand.vmem [shape: f32[128,32], index: 0, kind: input, shape index: {}]
  %s1 = inlined_call_operand.vmem [shape: f32[32,64], index: 1, kind: input, shape index: {}]
  %s2 = inlined_call_operand.vmem [shape: f32[1,16], index: 2, kind: input, shape index: {}]
  %s3 = inlined_call_operand.vmem [shape: f32[1,16], index: 3, kind: input, shape index: {}]
  %s4 = inlined_call_operand.hbm [shape: f32[16,2,8,32], index: 4, kind: output, shape index: {}]
  %s5 = sld [smem:[#allocation0]]
  $region49: #{tpu_custom_call.1} parent=0
    _
  %s7 = ssub.s32 1, %s5
  %s8 = scalar_select 0, %s7, %s5
  $region1: #{tpu_custom_call.1} parent=0
    #allocation2 [shape = 'u8[131072]{0}', space=vmem, size = 0x20000, scoped, tag = 'output window, operand 0']
    #allocation3 [shape = 's32[2]{0}', space=sflag, size = 0x8, scoped, tag = 'scoped memory for tpu_custom_call.1']
    %9 = vsyncpa [#allocation3], 0
    %s10 = scalar_lea.sflag [#allocation3], 1
    %11 = vsyncpa %s10, 0
    loop: start=0, step=1, limit=4
    $region2: #{tpu_custom_call.1} parent=1 // loop_pre_header
      _
    $region3: #{tpu_custom_call.1} parent=1 // loop_header
      %s13 = sphi 0, %s17
      %p14 = scmp.ge.s32.totalorder %s13, 4
      %s23 = sphi 0, %s25
      %s26 = sphi 0, %s23
      %s27 = sphi 0, %s26
      %s43 = sphi 0, %s27
      %s47 = sphi 0, %s47
      %s49 = sphi 0, %s47
      %s50 = sphi 0, %s49
      %s64 = sphi 0, %s50
      %s68 = sphi 0, %s68
      %s70 = sphi 0, %s68
      %s71 = sphi 0, %s70
      %s85 = sphi 0, %s71
      %s89 = sphi 0, %s89
      %s91 = sphi 0, %s89
      %s92 = sphi 0, %s91
      %s106 = sphi 0, %s92
      %s112 = sphi 0, %s114
      %s115 = sphi 0, %s112
      %s116 = sphi 0, %s115
      %s132 = sphi 0, %s116
    $region4: #{tpu_custom_call.1} parent=1 // loop_header_branch
      %16 = sbr.rel (%p14) target = $region8
    $region5: #{tpu_custom_call.1} parent=1 // loop_body
      %s18 = ssub.s32 %s13, 1
      %s19 = ssub.s32 %s13, 2
      %s20 = sadd.s32 %s13, 1
      %s21 = ssub.s32 %s13, %s20
      %p22 = scmp.eq.s32.totalorder %s21, 0
      %s24 = sadd.s32 %s23, 1
      %s25 = scalar_select %p22, %s23, %s24
      %p28 = pneg %p22
      %p29 = scmp.eq.s32.totalorder %s13, 1
      %p30 = por %p28, %p29
      %p31 = scmp.ne.s32.totalorder %s23, %s26
      %p32 = scmp.eq.s32.totalorder %s13, 0
      %p33 = por %p31, %p32
      %p34 = scmp.ne.s32.totalorder %s23, %s26
      %p35 = scmp.eq.s32.totalorder %s18, 1
      %p36 = por %p34, %p35
      %p37 = scmp.ne.s32.totalorder %s26, %s27
      %p38 = scmp.eq.s32.totalorder %s18, 0
      %p39 = por %p37, %p38
      %p40 = scmp.ne.s32.totalorder %s26, %s27
      %p41 = scmp.eq.s32.totalorder %s19, 1
      %p42 = por %p40, %p41
      %p44 = scmp.ne.s32.totalorder %s27, %s43
      %p45 = scmp.eq.s32.totalorder %s19, 0
      %p46 = por %p44, %p45
      %s48 = sadd.s32 %s47, 1
      %p51 = scmp.eq.s32.totalorder %s13, 1
      %p52 = scmp.ne.s32.totalorder %s47, %s49
      %p53 = scmp.eq.s32.totalorder %s13, 0
      %p54 = por %p52, %p53
      %p55 = scmp.ne.s32.totalorder %s47, %s49
      %p56 = scmp.eq.s32.totalorder %s18, 1
      %p57 = por %p55, %p56
      %p58 = scmp.ne.s32.totalorder %s49, %s50
      %p59 = scmp.eq.s32.totalorder %s18, 0
      %p60 = por %p58, %p59
      %p61 = scmp.ne.s32.totalorder %s49, %s50
      %p62 = scmp.eq.s32.totalorder %s19, 1
      %p63 = por %p61, %p62
      %p65 = scmp.ne.s32.totalorder %s50, %s64
      %p66 = scmp.eq.s32.totalorder %s19, 0
      %p67 = por %p65, %p66
      %s69 = sadd.s32 %s68, 1
      %p72 = scmp.eq.s32.totalorder %s13, 1
      %p73 = scmp.ne.s32.totalorder %s68, %s70
      %p74 = scmp.eq.s32.totalorder %s13, 0
      %p75 = por %p73, %p74
      %p76 = scmp.ne.s32.totalorder %s68, %s70
      %p77 = scmp.eq.s32.totalorder %s18, 1
      %p78 = por %p76, %p77
      %p79 = scmp.ne.s32.totalorder %s70, %s71
      %p80 = scmp.eq.s32.totalorder %s18, 0
      %p81 = por %p79, %p80
      %p82 = scmp.ne.s32.totalorder %s70, %s71
      %p83 = scmp.eq.s32.totalorder %s19, 1
      %p84 = por %p82, %p83
      %p86 = scmp.ne.s32.totalorder %s71, %s85
      %p87 = scmp.eq.s32.totalorder %s19, 0
      %p88 = por %p86, %p87
      %s90 = sadd.s32 %s89, 1
      %p93 = scmp.eq.s32.totalorder %s13, 1
      %p94 = scmp.ne.s32.totalorder %s89, %s91
      %p95 = scmp.eq.s32.totalorder %s13, 0
      %p96 = por %p94, %p95
      %p97 = scmp.ne.s32.totalorder %s89, %s91
      %p98 = scmp.eq.s32.totalorder %s18, 1
      %p99 = por %p97, %p98
      %p100 = scmp.ne.s32.totalorder %s91, %s92
      %p101 = scmp.eq.s32.totalorder %s18, 0
      %p102 = por %p100, %p101
      %p103 = scmp.ne.s32.totalorder %s91, %s92
      %p104 = scmp.eq.s32.totalorder %s19, 1
      %p105 = por %p103, %p104
      %p107 = scmp.ne.s32.totalorder %s92, %s106
      %p108 = scmp.eq.s32.totalorder %s19, 0
      %p109 = por %p107, %p108
      %s110 = ssub.s32 %s13, %s20
      %p111 = scmp.eq.s32.totalorder %s110, 0
      %s113 = sadd.s32 %s112, 1
      %s114 = scalar_select %p111, %s112, %s113
      %p117 = pneg %p111
      %p118 = scmp.eq.s32.totalorder %s13, 1
      %p119 = por %p117, %p118
      %p120 = scmp.ne.s32.totalorder %s112, %s115
      %p121 = scmp.eq.s32.totalorder %s13, 0
      %p122 = por %p120, %p121
      %p123 = scmp.ne.s32.totalorder %s112, %s115
      %p124 = scmp.eq.s32.totalorder %s18, 1
      %p125 = por %p123, %p124
      %p126 = scmp.ne.s32.totalorder %s115, %s116
      %p127 = scmp.eq.s32.totalorder %s18, 0
      %p128 = por %p126, %p127
      %p129 = scmp.ne.s32.totalorder %s115, %s116
      %p130 = scmp.eq.s32.totalorder %s19, 1
      %p131 = por %p129, %p130
      %p133 = scmp.ne.s32.totalorder %s116, %s132
      %p134 = scmp.eq.s32.totalorder %s19, 0
      %p135 = por %p133, %p134
      %p136 = scmp.le.s32.totalorder 1, %s13
      %p137 = scmp.lt.s32.totalorder %s13, 3
      %p138 = pnand %p136, %p137
      %p139 = pneg %p138
      // Predicated region
      $region9: #{tpu_custom_call.1} parent=5 // pred_check
        _
      $region10: #{tpu_custom_call.1} parent=5 // pred_check_branch
        %141 = sbr.rel (%p138) target = $region12
      $region11: #{tpu_custom_call.1} parent=5 // pred_region
        %s142 = ssub.s32 %s13, 1
        // Predicated region
        $region13: #{tpu_custom_call.1} parent=11 // pred_check
          %p143 = pneg %p60
        $region14: #{tpu_custom_call.1} parent=11 // pred_check_branch
          %145 = sbr.rel (%p143) target = $region16
        $region15: #{tpu_custom_call.1} parent=11 // pred_region
          _
        $region16: #{tpu_custom_call.1} parent=11 // pred_fallthru
          _
        // Predicated region
        $region17: #{tpu_custom_call.1} parent=11 // pred_check
          %p146 = pneg %p81
        $region18: #{tpu_custom_call.1} parent=11 // pred_check_branch
          %148 = sbr.rel (%p146) target = $region20
        $region19: #{tpu_custom_call.1} parent=11 // pred_region
          _
        $region20: #{tpu_custom_call.1} parent=11 // pred_fallthru
          _
        // Predicated region
        $region21: #{tpu_custom_call.1} parent=11 // pred_check
          %p149 = pneg %p102
        $region22: #{tpu_custom_call.1} parent=11 // pred_check_branch
          %151 = sbr.rel (%p149) target = $region24
        $region23: #{tpu_custom_call.1} parent=11 // pred_region
          _
        $region24: #{tpu_custom_call.1} parent=11 // pred_fallthru
          _
      $region12: #{tpu_custom_call.1} parent=5 // pred_fallthru
        _
      %p152 = scmp.lt.s32.totalorder %s13, 2
      // Predicated region
      $region25: #{tpu_custom_call.1} parent=5 // pred_check
        %p153 = pneg %p152
      $region26: #{tpu_custom_call.1} parent=5 // pred_check_branch
        %155 = sbr.rel (%p153) target = $region28
      $region27: #{tpu_custom_call.1} parent=5 // pred_region
        // Predicated region
        $region29: #{tpu_custom_call.1} parent=27 // pred_check
          %p156 = pneg %p33
        $region30: #{tpu_custom_call.1} parent=27 // pred_check_branch
          %158 = sbr.rel (%p156) target = $region32
        $region31: #{tpu_custom_call.1} parent=27 // pred_region
          %s159 = smul.u32 8, %s13
          %p160 = scmp.lt.s32.totalorder %s159, 15
          %s161 = scalar_select %p160, %s159, 15
          %s162 = smul.addr %s161, 8
          %s163 = scalar_lea.vmem %s0, %s162
          %s164 = smul.u32 8, %s13
        $region32: #{tpu_custom_call.1} parent=27 // pred_fallthru
          _
      $region28: #{tpu_custom_call.1} parent=5 // pred_fallthru
        _
      %p165 = scmp.le.s32.totalorder 1, %s13
      %p166 = scmp.lt.s32.totalorder %s13, 3
      %p167 = pnand %p165, %p166
      %p168 = pneg %p167
      // Predicated region
      $region33: #{tpu_custom_call.1} parent=5 // pred_check
        _
      $region34: #{tpu_custom_call.1} parent=5 // pred_check_branch
        %170 = sbr.rel (%p167) target = $region36
      $region35: #{tpu_custom_call.1} parent=5 // pred_region
        %s171 = ssub.s32 %s13, 1
        %s172 = smul.u32 8, %s18
        %p173 = scmp.lt.s32.totalorder %s172, 15
        %s174 = scalar_select %p173, %s172, 15
        %s175 = smul.addr %s174, 8
        %s176 = scalar_lea.vmem %s0, %s175
        %p177 = pneg %p39
        %p178 = pneg %p36
        %p179 = pneg %p60
        %p180 = pneg %p57
        %p181 = pneg %p81
        %p182 = pneg %p78
        %p183 = pneg %p102
        %p184 = pneg %p99
        %p185 = pneg %p128
        %p186 = pneg %p125
        %s187 = sand.u32 %s115, 1
        %s188 = scalar_lea.sflag [#allocation3], %s187
        %s189 = sand.u32 %s115, 1
        %s190 = smul.addr %s189, 128
        %s191 = scalar_lea.vmem [#allocation2], %s190
        %s192 = smul.u32 8, %s18
        %p193 = scmp.lt.s32.totalorder %s192, 15
        %s194 = scalar_select %p193, %s192, 15
        %s195 = smul.addr %s194, 8
        %s196 = scalar_lea.vmem %s0, %s195
        %s197 = smul.u32 8, %s18
        %s198 = smul.u32 8, %s18
        %v199 = vld [vmem:[%s196] sm:$0xff]
        %v200 = vld [vmem:[%s196 + $0x8] sm:$0xff]
        %v201 = vld [vmem:[%s196 + $0x10] sm:$0xff]
        %v202 = vld [vmem:[%s196 + $0x18] sm:$0xff]
        %v203 = vld [vmem:[%s196 + $0x20] sm:$0xff]
        %v204 = vld [vmem:[%s196 + $0x28] sm:$0xff]
        %v205 = vld [vmem:[%s196 + $0x30] sm:$0xff]
        %v206 = vld [vmem:[%s196 + $0x38] sm:$0xff]
        %v207 = vld [vmem:[%s1] sm:$0xff]
        %v208 = vld [vmem:[%s1 + $0x8] sm:$0xff]
        %v209 = vld [vmem:[%s1 + $0x10] sm:$0xff]
        %v210 = vld [vmem:[%s1 + $0x18] sm:$0xff]
        %vm211 = vcmask 261120
        %v213 = vsel %vm211, %v199, 0
        %v216 = vsel %vm211, %v200, 0
        %v219 = vsel %vm211, %v201, 0
        %v222 = vsel %vm211, %v202, 0
        %v225 = vsel %vm211, %v203, 0
        %v228 = vsel %vm211, %v204, 0
        %v231 = vsel %vm211, %v205, 0
        %v234 = vsel %vm211, %v206, 0
        %236 = vmatprep.subr.mxu0 0.0
        %237 = vmatpush1.msra.mxu0 0.0
        %238 = vmatprep.subr.mxu0 0.0
        %239 = vmatpush1.msra.mxu0 0.0
        %240 = vmatprep.subr.mxu0 0.0
        %241 = vmatpush1.msra.mxu0 0.0
        %242 = vmatprep.subr.mxu0 0.0
        %243 = vmatpush1.msra.mxu0 0.0
        %244 = vmatprep.subr.mxu0 0.0
        %245 = vmatpush1.msra.mxu0 0.0
        %246 = vmatprep.subr.mxu0 0.0
        %247 = vmatpush1.msra.mxu0 0.0
        %248 = vmatprep.subr.mxu0 0.0
        %249 = vmatpush1.msra.mxu0 0.0
        %250 = vmatprep.subr.mxu0 0.0
        %251 = vmatpush1.msra.mxu0 0.0
        %252 = vmatprep.subr.mxu0 0.0
        %253 = vmatpush1.msra.mxu0 0.0
        %254 = vmatprep.subr.mxu0 0.0
        %255 = vmatpush1.msra.mxu0 0.0
        %256 = vmatprep.subr.mxu0 0.0
        %257 = vmatpush1.msra.mxu0 0.0
        %258 = vmatprep.subr.mxu0 0.0
        %259 = vmatpush1.msra.mxu0 0.0
        %260 = vmatprep.subr.mxu0 0.0
        %261 = vmatpush1.msra.mxu0 %v210
        %262 = vmatprep.subr.mxu0 0.0
        %263 = vmatpush1.msra.mxu0 %v209
        %264 = vmatprep.subr.mxu0 0.0
        %265 = vmatpush1.msra.mxu0 %v208
        %266 = vmatprep.subr.mxu0 0.0
        %267 = vmatpush1.msra.mxu0 %v207
        %268 = vmatprep.subr.mxu0 0.0
        %269 = vmatpush2.msra.mxu0 0.0
        %270 = vmatprep.subr.mxu0 0.0
        %271 = vmatpush2.msra.mxu0 0.0
        %272 = vmatprep.subr.mxu0 0.0
        %273 = vmatpush2.msra.mxu0 0.0
        %274 = vmatprep.subr.mxu0 0.0
        %275 = vmatpush2.msra.mxu0 0.0
        %276 = vmatprep.subr.mxu0 0.0
        %277 = vmatpush2.msra.mxu0 0.0
        %278 = vmatprep.subr.mxu0 0.0
        %279 = vmatpush2.msra.mxu0 0.0
        %280 = vmatprep.subr.mxu0 0.0
        %281 = vmatpush2.msra.mxu0 0.0
        %282 = vmatprep.subr.mxu0 0.0
        %283 = vmatpush2.msra.mxu0 0.0
        %284 = vmatprep.subr.mxu0 0.0
        %285 = vmatpush2.msra.mxu0 0.0
        %286 = vmatprep.subr.mxu0 0.0
        %287 = vmatpush2.msra.mxu0 0.0
        %288 = vmatprep.subr.mxu0 0.0
        %289 = vmatpush2.msra.mxu0 0.0
        %290 = vmatprep.subr.mxu0 0.0
        %291 = vmatpush2.msra.mxu0 0.0
        %292 = vmatprep.subr.mxu0 0.0
        %293 = vmatpush2.msra.mxu0 0.0
        %294 = vmatprep.subr.mxu0 0.0
        %295 = vmatpush2.msra.mxu0 0.0
        %296 = vmatprep.subr.mxu0 0.0
        %297 = vmatpush2.msra.mxu0 0.0
        %298 = vmatprep.subr.mxu0 0.0
        %299 = vmatpush2.msra.mxu0 0.0
        %300 = vmatprep.mubr.f32.mxu0 0.0
        %301 = vmatmul.mubr.f32.gmra.mxu0 %v213
        %v302 = vpop.f32.mrf.mxu0
        %v303 = vadd.f32 0.0, %v302
        %v304 = vpop.f32.mrf.mxu0
        %305 = vmatprep.mubr.f32.mxu0 0.0
        %306 = vmatmul.mubr.f32.gmra.mxu0 %v216
        %v307 = vpop.f32.mrf.mxu0
        %v308 = vadd.f32 0.0, %v307
        %v309 = vpop.f32.mrf.mxu0
        %310 = vmatprep.mubr.f32.mxu0 0.0
        %311 = vmatmul.mubr.f32.gmra.mxu0 %v219
        %v312 = vpop.f32.mrf.mxu0
        %v313 = vadd.f32 0.0, %v312
        %v314 = vpop.f32.mrf.mxu0
        %315 = vmatprep.mubr.f32.mxu0 0.0
        %316 = vmatmul.mubr.f32.gmra.mxu0 %v222
        %v317 = vpop.f32.mrf.mxu0
        %v318 = vadd.f32 0.0, %v317
        %v319 = vpop.f32.mrf.mxu0
        %320 = vmatprep.mubr.f32.mxu0 0.0
        %321 = vmatmul.mubr.f32.gmra.mxu0 %v225
        %v322 = vpop.f32.mrf.mxu0
        %v323 = vadd.f32 0.0, %v322
        %v324 = vpop.f32.mrf.mxu0
        %325 = vmatprep.mubr.f32.mxu0 0.0
        %326 = vmatmul.mubr.f32.gmra.mxu0 %v228
        %v327 = vpop.f32.mrf.mxu0
        %v328 = vadd.f32 0.0, %v327
        %v329 = vpop.f32.mrf.mxu0
        %330 = vmatprep.mubr.f32.mxu0 0.0
        %331 = vmatmul.mubr.f32.gmra.mxu0 %v231
        %v332 = vpop.f32.mrf.mxu0
        %v333 = vadd.f32 0.0, %v332
        %v334 = vpop.f32.mrf.mxu0
        %335 = vmatprep.mubr.f32.mxu0 0.0
        %336 = vmatmul.mubr.f32.gmra.mxu0 %v234
        %v337 = vpop.f32.mrf.mxu0
        %v338 = vadd.f32 0.0, %v337
        %v339 = vpop.f32.mrf.mxu0
        %340 = vdwg.mxu0
        %v341 = vld [vmem:[%s2] sm:$0x1]
        %v342 = vld [vmem:[%s3] sm:$0x1]
        %vm343 = vcmask 130048
        %v344 = vsel %vm343, %v303, 0.0
        %345 = vadd.xlane.f32.xlu0 %v344
        %v346 = vpop.xlane.xlu0 %345
        %v347 = vsel %vm343, %v308, 0.0
        %348 = vadd.xlane.f32.xlu0 %v347
        %v349 = vpop.xlane.xlu0 %348
        %v350 = vsel %vm343, %v313, 0.0
        %351 = vadd.xlane.f32.xlu0 %v350
        %v352 = vpop.xlane.xlu0 %351
        %v353 = vsel %vm343, %v318, 0.0
        %354 = vadd.xlane.f32.xlu0 %v353
        %v355 = vpop.xlane.xlu0 %354
        %v356 = vsel %vm343, %v323, 0.0
        %357 = vadd.xlane.f32.xlu0 %v356
        %v358 = vpop.xlane.xlu0 %357
        %v359 = vsel %vm343, %v328, 0.0
        %360 = vadd.xlane.f32.xlu0 %v359
        %v361 = vpop.xlane.xlu0 %360
        %v362 = vsel %vm343, %v333, 0.0
        %363 = vadd.xlane.f32.xlu0 %v362
        %v364 = vpop.xlane.xlu0 %363
        %v365 = vsel %vm343, %v338, 0.0
        %366 = vadd.xlane.f32.xlu0 %v365
        %v367 = vpop.xlane.xlu0 %366
        %v368 = vrcp.pop 16.0
        %v369 = vmul.f32 %v346, %v368
        %v370 = vmul.f32 %v349, %v368
        %v371 = vmul.f32 %v352, %v368
        %v372 = vmul.f32 %v355, %v368
        %v373 = vmul.f32 %v358, %v368
        %v374 = vmul.f32 %v361, %v368
        %v375 = vmul.f32 %v364, %v368
        %v376 = vmul.f32 %v367, %v368
        %v377 = vsub.f32 %v303, %v369
        %v378 = vsub.f32 %v308, %v370
        %v379 = vsub.f32 %v313, %v371
        %v380 = vsub.f32 %v318, %v372
        %v381 = vsub.f32 %v323, %v373
        %v382 = vsub.f32 %v328, %v374
        %v383 = vsub.f32 %v333, %v375
        %v384 = vsub.f32 %v338, %v376
        %v385 = vmul.f32 %v377, %v377
        %v386 = vmul.f32 %v378, %v378
        %v387 = vmul.f32 %v379, %v379
        %v388 = vmul.f32 %v380, %v380
        %v389 = vmul.f32 %v381, %v381
        %v390 = vmul.f32 %v382, %v382
        %v391 = vmul.f32 %v383, %v383
        %v392 = vmul.f32 %v384, %v384
        %v393 = vsel %vm343, %v385, 0.0
        %394 = vadd.xlane.f32.xlu0 %v393
        %v395 = vpop.xlane.xlu0 %394
        %v396 = vsel %vm343, %v386, 0.0
        %397 = vadd.xlane.f32.xlu0 %v396
        %v398 = vpop.xlane.xlu0 %397
        %v399 = vsel %vm343, %v387, 0.0
        %400 = vadd.xlane.f32.xlu0 %v399
        %v401 = vpop.xlane.xlu0 %400
        %v402 = vsel %vm343, %v388, 0.0
        %403 = vadd.xlane.f32.xlu0 %v402
        %v404 = vpop.xlane.xlu0 %403
        %v405 = vsel %vm343, %v389, 0.0
        %406 = vadd.xlane.f32.xlu0 %v405
        %v407 = vpop.xlane.xlu0 %406
        %v408 = vsel %vm343, %v390, 0.0
        %409 = vadd.xlane.f32.xlu0 %v408
        %v410 = vpop.xlane.xlu0 %409
        %v411 = vsel %vm343, %v391, 0.0
        %412 = vadd.xlane.f32.xlu0 %v411
        %v413 = vpop.xlane.xlu0 %412
        %v414 = vsel %vm343, %v392, 0.0
        %415 = vadd.xlane.f32.xlu0 %v414
        %v416 = vpop.xlane.xlu0 %415
        %v417 = vmul.f32 %v395, %v368
        %v418 = vmul.f32 %v398, %v368
        %v419 = vmul.f32 %v401, %v368
        %v420 = vmul.f32 %v404, %v368
        %v421 = vmul.f32 %v407, %v368
        %v422 = vmul.f32 %v410, %v368
        %v423 = vmul.f32 %v413, %v368
        %v424 = vmul.f32 %v416, %v368
        %v425 = vadd.f32 %v417, 1e-05
        %v426 = vadd.f32 %v418, 1e-05
        %v427 = vadd.f32 %v419, 1e-05
        %v428 = vadd.f32 %v420, 1e-05
        %v429 = vadd.f32 %v421, 1e-05
        %v430 = vadd.f32 %v422, 1e-05
        %v431 = vadd.f32 %v423, 1e-05
        %v432 = vadd.f32 %v424, 1e-05
        %v433 = vrsqrt.pop %v425
        %v434 = vrsqrt.pop %v426
        %v435 = vrsqrt.pop %v427
        %v436 = vrsqrt.pop %v428
        %v437 = vrsqrt.pop %v429
        %v438 = vrsqrt.pop %v430
        %v439 = vrsqrt.pop %v431
        %v440 = vrsqrt.pop %v432
        %v442 = vlaneseq
        %v443 = vshrl.u32 %v442, 7
        %v444 = vsub.s32 0, %v443
        %v445 = vrot.slane %v341, %v444
        %v447 = vmul.f32 %v433, %v445
        %v448 = vmul.f32 %v434, %v445
        %v449 = vmul.f32 %v435, %v445
        %v450 = vmul.f32 %v436, %v445
        %v451 = vmul.f32 %v437, %v445
        %v452 = vmul.f32 %v438, %v445
        %v453 = vmul.f32 %v439, %v445
        %v454 = vmul.f32 %v440, %v445
        %v455 = vmul.f32 %v377, %v447
        %v456 = vmul.f32 %v378, %v448
        %v457 = vmul.f32 %v379, %v449
        %v458 = vmul.f32 %v380, %v450
        %v459 = vmul.f32 %v381, %v451
        %v460 = vmul.f32 %v382, %v452
        %v461 = vmul.f32 %v383, %v453
        %v462 = vmul.f32 %v384, %v454
        %v464 = vlaneseq
        %v465 = vshrl.u32 %v464, 7
        %v466 = vsub.s32 0, %v465
        %v467 = vrot.slane %v342, %v466
        %v469 = vadd.f32 %v455, %v467
        %v470 = vadd.f32 %v456, %v467
        %v471 = vadd.f32 %v457, %v467
        %v472 = vadd.f32 %v458, %v467
        %v473 = vadd.f32 %v459, %v467
        %v474 = vadd.f32 %v460, %v467
        %v475 = vadd.f32 %v461, %v467
        %v476 = vadd.f32 %v462, %v467
        %477 = vst.msk [vmem:[%s191] sm:$0xff] %vm343, %v469
        %478 = vst.msk [vmem:[%s191 + $0x10] sm:$0xff] %vm343, %v470
        %479 = vst.msk [vmem:[%s191 + $0x20] sm:$0xff] %vm343, %v471
        %480 = vst.msk [vmem:[%s191 + $0x30] sm:$0xff] %vm343, %v472
        %481 = vst.msk [vmem:[%s191 + $0x40] sm:$0xff] %vm343, %v473
        %482 = vst.msk [vmem:[%s191 + $0x50] sm:$0xff] %vm343, %v474
        %483 = vst.msk [vmem:[%s191 + $0x60] sm:$0xff] %vm343, %v475
        %484 = vst.msk [vmem:[%s191 + $0x70] sm:$0xff] %vm343, %v476
        %493 = vrot.lane.b32.xlu0 %v303, 112
        %v494 = vpop.permute.xlu0 %493
        %495 = vrot.lane.b32.xlu0 %v308, 112
        %v496 = vpop.permute.xlu0 %495
        %497 = vrot.lane.b32.xlu0 %v313, 112
        %v498 = vpop.permute.xlu0 %497
        %499 = vrot.lane.b32.xlu0 %v318, 112
        %v500 = vpop.permute.xlu0 %499
        %501 = vrot.lane.b32.xlu0 %v323, 112
        %v502 = vpop.permute.xlu0 %501
        %503 = vrot.lane.b32.xlu0 %v328, 112
        %v504 = vpop.permute.xlu0 %503
        %505 = vrot.lane.b32.xlu0 %v333, 112
        %v506 = vpop.permute.xlu0 %505
        %507 = vrot.lane.b32.xlu0 %v338, 112
        %v508 = vpop.permute.xlu0 %507
        %v517 = vsel %vm343, %v494, 0.0
        %518 = vadd.xlane.f32.xlu0 %v517
        %v519 = vpop.xlane.xlu0 %518
        %v520 = vsel %vm343, %v496, 0.0
        %521 = vadd.xlane.f32.xlu0 %v520
        %v522 = vpop.xlane.xlu0 %521
        %v523 = vsel %vm343, %v498, 0.0
        %524 = vadd.xlane.f32.xlu0 %v523
        %v525 = vpop.xlane.xlu0 %524
        %v526 = vsel %vm343, %v500, 0.0
        %527 = vadd.xlane.f32.xlu0 %v526
        %v528 = vpop.xlane.xlu0 %527
        %v529 = vsel %vm343, %v502, 0.0
        %530 = vadd.xlane.f32.xlu0 %v529
        %v531 = vpop.xlane.xlu0 %530
        %v532 = vsel %vm343, %v504, 0.0
        %533 = vadd.xlane.f32.xlu0 %v532
        %v534 = vpop.xlane.xlu0 %533
        %v535 = vsel %vm343, %v506, 0.0
        %536 = vadd.xlane.f32.xlu0 %v535
        %v537 = vpop.xlane.xlu0 %536
        %v538 = vsel %vm343, %v508, 0.0
        %539 = vadd.xlane.f32.xlu0 %v538
        %v540 = vpop.xlane.xlu0 %539
        %v541 = vmul.f32 %v519, %v368
        %v542 = vmul.f32 %v522, %v368
        %v543 = vmul.f32 %v525, %v368
        %v544 = vmul.f32 %v528, %v368
        %v545 = vmul.f32 %v531, %v368
        %v546 = vmul.f32 %v534, %v368
        %v547 = vmul.f32 %v537, %v368
        %v548 = vmul.f32 %v540, %v368
        %v549 = vsub.f32 %v303, %v541
        %v550 = vsub.f32 %v308, %v542
        %v551 = vsub.f32 %v313, %v543
        %v552 = vsub.f32 %v318, %v544
        %v553 = vsub.f32 %v323, %v545
        %v554 = vsub.f32 %v328, %v546
        %v555 = vsub.f32 %v333, %v547
        %v556 = vsub.f32 %v338, %v548
        %v557 = vmul.f32 %v549, %v549
        %v558 = vmul.f32 %v550, %v550
        %v559 = vmul.f32 %v551, %v551
        %v560 = vmul.f32 %v552, %v552
        %v561 = vmul.f32 %v553, %v553
        %v562 = vmul.f32 %v554, %v554
        %v563 = vmul.f32 %v555, %v555
        %v564 = vmul.f32 %v556, %v556
        %573 = vrot.lane.b32.xlu0 %v557, 112
        %v574 = vpop.permute.xlu0 %573
        %575 = vrot.lane.b32.xlu0 %v558, 112
        %v576 = vpop.permute.xlu0 %575
        %577 = vrot.lane.b32.xlu0 %v559, 112
        %v578 = vpop.permute.xlu0 %577
        %579 = vrot.lane.b32.xlu0 %v560, 112
        %v580 = vpop.permute.xlu0 %579
        %581 = vrot.lane.b32.xlu0 %v561, 112
        %v582 = vpop.permute.xlu0 %581
        %583 = vrot.lane.b32.xlu0 %v562, 112
        %v584 = vpop.permute.xlu0 %583
        %585 = vrot.lane.b32.xlu0 %v563, 112
        %v586 = vpop.permute.xlu0 %585
        %587 = vrot.lane.b32.xlu0 %v564, 112
        %v588 = vpop.permute.xlu0 %587
        %v597 = vsel %vm343, %v574, 0.0
        %598 = vadd.xlane.f32.xlu0 %v597
        %v599 = vpop.xlane.xlu0 %598
        %v600 = vsel %vm343, %v576, 0.0
        %601 = vadd.xlane.f32.xlu0 %v600
        %v602 = vpop.xlane.xlu0 %601
        %v603 = vsel %vm343, %v578, 0.0
        %604 = vadd.xlane.f32.xlu0 %v603
        %v605 = vpop.xlane.xlu0 %604
        %v606 = vsel %vm343, %v580, 0.0
        %607 = vadd.xlane.f32.xlu0 %v606
        %v608 = vpop.xlane.xlu0 %607
        %v609 = vsel %vm343, %v582, 0.0
        %610 = vadd.xlane.f32.xlu0 %v609
        %v611 = vpop.xlane.xlu0 %610
        %v612 = vsel %vm343, %v584, 0.0
        %613 = vadd.xlane.f32.xlu0 %v612
        %v614 = vpop.xlane.xlu0 %613
        %v615 = vsel %vm343, %v586, 0.0
        %616 = vadd.xlane.f32.xlu0 %v615
        %v617 = vpop.xlane.xlu0 %616
        %v618 = vsel %vm343, %v588, 0.0
        %619 = vadd.xlane.f32.xlu0 %v618
        %v620 = vpop.xlane.xlu0 %619
        %v621 = vmul.f32 %v599, %v368
        %v622 = vmul.f32 %v602, %v368
        %v623 = vmul.f32 %v605, %v368
        %v624 = vmul.f32 %v608, %v368
        %v625 = vmul.f32 %v611, %v368
        %v626 = vmul.f32 %v614, %v368
        %v627 = vmul.f32 %v617, %v368
        %v628 = vmul.f32 %v620, %v368
        %v629 = vadd.f32 %v621, 1e-05
        %v630 = vadd.f32 %v622, 1e-05
        %v631 = vadd.f32 %v623, 1e-05
        %v632 = vadd.f32 %v624, 1e-05
        %v633 = vadd.f32 %v625, 1e-05
        %v634 = vadd.f32 %v626, 1e-05
        %v635 = vadd.f32 %v627, 1e-05
        %v636 = vadd.f32 %v628, 1e-05
        %v637 = vrsqrt.pop %v629
        %v638 = vrsqrt.pop %v630
        %v639 = vrsqrt.pop %v631
        %v640 = vrsqrt.pop %v632
        %v641 = vrsqrt.pop %v633
        %v642 = vrsqrt.pop %v634
        %v643 = vrsqrt.pop %v635
        %v644 = vrsqrt.pop %v636
        %v645 = vmul.f32 %v637, %v445
        %v646 = vmul.f32 %v638, %v445
        %v647 = vmul.f32 %v639, %v445
        %v648 = vmul.f32 %v640, %v445
        %v649 = vmul.f32 %v641, %v445
        %v650 = vmul.f32 %v642, %v445
        %v651 = vmul.f32 %v643, %v445
        %v652 = vmul.f32 %v644, %v445
        %661 = vrot.lane.b32.xlu0 %v645, 16
        %v662 = vpop.permute.xlu0 %661
        %663 = vrot.lane.b32.xlu0 %v646, 16
        %v664 = vpop.permute.xlu0 %663
        %665 = vrot.lane.b32.xlu0 %v647, 16
        %v666 = vpop.permute.xlu0 %665
        %667 = vrot.lane.b32.xlu0 %v648, 16
        %v668 = vpop.permute.xlu0 %667
        %669 = vrot.lane.b32.xlu0 %v649, 16
        %v670 = vpop.permute.xlu0 %669
        %671 = vrot.lane.b32.xlu0 %v650, 16
        %v672 = vpop.permute.xlu0 %671
        %673 = vrot.lane.b32.xlu0 %v651, 16
        %v674 = vpop.permute.xlu0 %673
        %675 = vrot.lane.b32.xlu0 %v652, 16
        %v676 = vpop.permute.xlu0 %675
        %v685 = vmul.f32 %v549, %v662
        %v686 = vmul.f32 %v550, %v664
        %v687 = vmul.f32 %v551, %v666
        %v688 = vmul.f32 %v552, %v668
        %v689 = vmul.f32 %v553, %v670
        %v690 = vmul.f32 %v554, %v672
        %v691 = vmul.f32 %v555, %v674
        %v692 = vmul.f32 %v556, %v676
        %693 = vrot.lane.b32.xlu0 %v467, 16
        %v694 = vpop.permute.xlu0 %693
        %v696 = vadd.f32 %v685, %v694
        %v697 = vadd.f32 %v686, %v694
        %v698 = vadd.f32 %v687, %v694
        %v699 = vadd.f32 %v688, %v694
        %v700 = vadd.f32 %v689, %v694
        %v701 = vadd.f32 %v690, %v694
        %v702 = vadd.f32 %v691, %v694
        %v703 = vadd.f32 %v692, %v694
        %vm704 = vcmask 261248
        %705 = vst.msk [vmem:[%s191] sm:$0xff] %vm704, %v696
        %706 = vst.msk [vmem:[%s191 + $0x10] sm:$0xff] %vm704, %v697
        %707 = vst.msk [vmem:[%s191 + $0x20] sm:$0xff] %vm704, %v698
        %708 = vst.msk [vmem:[%s191 + $0x30] sm:$0xff] %vm704, %v699
        %709 = vst.msk [vmem:[%s191 + $0x40] sm:$0xff] %vm704, %v700
        %710 = vst.msk [vmem:[%s191 + $0x50] sm:$0xff] %vm704, %v701
        %711 = vst.msk [vmem:[%s191 + $0x60] sm:$0xff] %vm704, %v702
        %712 = vst.msk [vmem:[%s191 + $0x70] sm:$0xff] %vm704, %v703
        %713 = vrot.lane.b32.xlu0 %v303, 96
        %v714 = vpop.permute.xlu0 %713
        %715 = vrot.lane.b32.xlu0 %v308, 96
        %v716 = vpop.permute.xlu0 %715
        %717 = vrot.lane.b32.xlu0 %v313, 96
        %v718 = vpop.permute.xlu0 %717
        %719 = vrot.lane.b32.xlu0 %v318, 96
        %v720 = vpop.permute.xlu0 %719
        %721 = vrot.lane.b32.xlu0 %v323, 96
        %v722 = vpop.permute.xlu0 %721
        %723 = vrot.lane.b32.xlu0 %v328, 96
        %v724 = vpop.permute.xlu0 %723
        %725 = vrot.lane.b32.xlu0 %v333, 96
        %v726 = vpop.permute.xlu0 %725
        %727 = vrot.lane.b32.xlu0 %v338, 96
        %v728 = vpop.permute.xlu0 %727
        %v737 = vsel %vm343, %v714, 0.0
        %738 = vadd.xlane.f32.xlu0 %v737
        %v739 = vpop.xlane.xlu0 %738
        %v740 = vsel %vm343, %v716, 0.0
        %741 = vadd.xlane.f32.xlu0 %v740
        %v742 = vpop.xlane.xlu0 %741
        %v743 = vsel %vm343, %v718, 0.0
        %744 = vadd.xlane.f32.xlu0 %v743
        %v745 = vpop.xlane.xlu0 %744
        %v746 = vsel %vm343, %v720, 0.0
        %747 = vadd.xlane.f32.xlu0 %v746
        %v748 = vpop.xlane.xlu0 %747
        %v749 = vsel %vm343, %v722, 0.0
        %750 = vadd.xlane.f32.xlu0 %v749
        %v751 = vpop.xlane.xlu0 %750
        %v752 = vsel %vm343, %v724, 0.0
        %753 = vadd.xlane.f32.xlu0 %v752
        %v754 = vpop.xlane.xlu0 %753
        %v755 = vsel %vm343, %v726, 0.0
        %756 = vadd.xlane.f32.xlu0 %v755
        %v757 = vpop.xlane.xlu0 %756
        %v758 = vsel %vm343, %v728, 0.0
        %759 = vadd.xlane.f32.xlu0 %v758
        %v760 = vpop.xlane.xlu0 %759
        %v761 = vmul.f32 %v739, %v368
        %v762 = vmul.f32 %v742, %v368
        %v763 = vmul.f32 %v745, %v368
        %v764 = vmul.f32 %v748, %v368
        %v765 = vmul.f32 %v751, %v368
        %v766 = vmul.f32 %v754, %v368
        %v767 = vmul.f32 %v757, %v368
        %v768 = vmul.f32 %v760, %v368
        %v769 = vsub.f32 %v303, %v761
        %v770 = vsub.f32 %v308, %v762
        %v771 = vsub.f32 %v313, %v763
        %v772 = vsub.f32 %v318, %v764
        %v773 = vsub.f32 %v323, %v765
        %v774 = vsub.f32 %v328, %v766
        %v775 = vsub.f32 %v333, %v767
        %v776 = vsub.f32 %v338, %v768
        %v777 = vmul.f32 %v769, %v769
        %v778 = vmul.f32 %v770, %v770
        %v779 = vmul.f32 %v771, %v771
        %v780 = vmul.f32 %v772, %v772
        %v781 = vmul.f32 %v773, %v773
        %v782 = vmul.f32 %v774, %v774
        %v783 = vmul.f32 %v775, %v775
        %v784 = vmul.f32 %v776, %v776
        %793 = vrot.lane.b32.xlu0 %v777, 96
        %v794 = vpop.permute.xlu0 %793
        %795 = vrot.lane.b32.xlu0 %v778, 96
        %v796 = vpop.permute.xlu0 %795
        %797 = vrot.lane.b32.xlu0 %v779, 96
        %v798 = vpop.permute.xlu0 %797
        %799 = vrot.lane.b32.xlu0 %v780, 96
        %v800 = vpop.permute.xlu0 %799
        %801 = vrot.lane.b32.xlu0 %v781, 96
        %v802 = vpop.permute.xlu0 %801
        %803 = vrot.lane.b32.xlu0 %v782, 96
        %v804 = vpop.permute.xlu0 %803
        %805 = vrot.lane.b32.xlu0 %v783, 96
        %v806 = vpop.permute.xlu0 %805
        %807 = vrot.lane.b32.xlu0 %v784, 96
        %v808 = vpop.permute.xlu0 %807
        %v817 = vsel %vm343, %v794, 0.0
        %818 = vadd.xlane.f32.xlu0 %v817
        %v819 = vpop.xlane.xlu0 %818
        %v820 = vsel %vm343, %v796, 0.0
        %821 = vadd.xlane.f32.xlu0 %v820
        %v822 = vpop.xlane.xlu0 %821
        %v823 = vsel %vm343, %v798, 0.0
        %824 = vadd.xlane.f32.xlu0 %v823
        %v825 = vpop.xlane.xlu0 %824
        %v826 = vsel %vm343, %v800, 0.0
        %827 = vadd.xlane.f32.xlu0 %v826
        %v828 = vpop.xlane.xlu0 %827
        %v829 = vsel %vm343, %v802, 0.0
        %830 = vadd.xlane.f32.xlu0 %v829
        %v831 = vpop.xlane.xlu0 %830
        %v832 = vsel %vm343, %v804, 0.0
        %833 = vadd.xlane.f32.xlu0 %v832
        %v834 = vpop.xlane.xlu0 %833
        %v835 = vsel %vm343, %v806, 0.0
        %836 = vadd.xlane.f32.xlu0 %v835
        %v837 = vpop.xlane.xlu0 %836
        %v838 = vsel %vm343, %v808, 0.0
        %839 = vadd.xlane.f32.xlu0 %v838
        %v840 = vpop.xlane.xlu0 %839
        %v841 = vmul.f32 %v819, %v368
        %v842 = vmul.f32 %v822, %v368
        %v843 = vmul.f32 %v825, %v368
        %v844 = vmul.f32 %v828, %v368
        %v845 = vmul.f32 %v831, %v368
        %v846 = vmul.f32 %v834, %v368
        %v847 = vmul.f32 %v837, %v368
        %v848 = vmul.f32 %v840, %v368
        %v849 = vadd.f32 %v841, 1e-05
        %v850 = vadd.f32 %v842, 1e-05
        %v851 = vadd.f32 %v843, 1e-05
        %v852 = vadd.f32 %v844, 1e-05
        %v853 = vadd.f32 %v845, 1e-05
        %v854 = vadd.f32 %v846, 1e-05
        %v855 = vadd.f32 %v847, 1e-05
        %v856 = vadd.f32 %v848, 1e-05
        %v857 = vrsqrt.pop %v849
        %v858 = vrsqrt.pop %v850
        %v859 = vrsqrt.pop %v851
        %v860 = vrsqrt.pop %v852
        %v861 = vrsqrt.pop %v853
        %v862 = vrsqrt.pop %v854
        %v863 = vrsqrt.pop %v855
        %v864 = vrsqrt.pop %v856
        %v865 = vmul.f32 %v857, %v445
        %v866 = vmul.f32 %v858, %v445
        %v867 = vmul.f32 %v859, %v445
        %v868 = vmul.f32 %v860, %v445
        %v869 = vmul.f32 %v861, %v445
        %v870 = vmul.f32 %v862, %v445
        %v871 = vmul.f32 %v863, %v445
        %v872 = vmul.f32 %v864, %v445
        %881 = vrot.lane.b32.xlu0 %v865, 32
        %v882 = vpop.permute.xlu0 %881
        %883 = vrot.lane.b32.xlu0 %v866, 32
        %v884 = vpop.permute.xlu0 %883
        %885 = vrot.lane.b32.xlu0 %v867, 32
        %v886 = vpop.permute.xlu0 %885
        %887 = vrot.lane.b32.xlu0 %v868, 32
        %v888 = vpop.permute.xlu0 %887
        %889 = vrot.lane.b32.xlu0 %v869, 32
        %v890 = vpop.permute.xlu0 %889
        %891 = vrot.lane.b32.xlu0 %v870, 32
        %v892 = vpop.permute.xlu0 %891
        %893 = vrot.lane.b32.xlu0 %v871, 32
        %v894 = vpop.permute.xlu0 %893
        %895 = vrot.lane.b32.xlu0 %v872, 32
        %v896 = vpop.permute.xlu0 %895
        %v905 = vmul.f32 %v769, %v882
        %v906 = vmul.f32 %v770, %v884
        %v907 = vmul.f32 %v771, %v886
        %v908 = vmul.f32 %v772, %v888
        %v909 = vmul.f32 %v773, %v890
        %v910 = vmul.f32 %v774, %v892
        %v911 = vmul.f32 %v775, %v894
        %v912 = vmul.f32 %v776, %v896
        %913 = vrot.lane.b32.xlu0 %v467, 32
        %v914 = vpop.permute.xlu0 %913
        %v916 = vadd.f32 %v905, %v914
        %v917 = vadd.f32 %v906, %v914
        %v918 = vadd.f32 %v907, %v914
        %v919 = vadd.f32 %v908, %v914
        %v920 = vadd.f32 %v909, %v914
        %v921 = vadd.f32 %v910, %v914
        %v922 = vadd.f32 %v911, %v914
        %v923 = vadd.f32 %v912, %v914
        %932 = vrot.lane.b32.xlu0 %v916, 96
        %v933 = vpop.permute.xlu0 %932
        %934 = vrot.lane.b32.xlu0 %v917, 96
        %v935 = vpop.permute.xlu0 %934
        %936 = vrot.lane.b32.xlu0 %v918, 96
        %v937 = vpop.permute.xlu0 %936
        %938 = vrot.lane.b32.xlu0 %v919, 96
        %v939 = vpop.permute.xlu0 %938
        %940 = vrot.lane.b32.xlu0 %v920, 96
        %v941 = vpop.permute.xlu0 %940
        %942 = vrot.lane.b32.xlu0 %v921, 96
        %v943 = vpop.permute.xlu0 %942
        %944 = vrot.lane.b32.xlu0 %v922, 96
        %v945 = vpop.permute.xlu0 %944
        %946 = vrot.lane.b32.xlu0 %v923, 96
        %v947 = vpop.permute.xlu0 %946
        %s956 = scalar_lea.vmem %s191, 8 [#allocation2]
        %957 = vst.msk [vmem:[%s956] sm:$0xff] %vm343, %v933
        %958 = vst.msk [vmem:[%s956 + $0x10] sm:$0xff] %vm343, %v935
        %959 = vst.msk [vmem:[%s956 + $0x20] sm:$0xff] %vm343, %v937
        %960 = vst.msk [vmem:[%s956 + $0x30] sm:$0xff] %vm343, %v939
        %961 = vst.msk [vmem:[%s956 + $0x40] sm:$0xff] %vm343, %v941
        %962 = vst.msk [vmem:[%s956 + $0x50] sm:$0xff] %vm343, %v943
        %963 = vst.msk [vmem:[%s956 + $0x60] sm:$0xff] %vm343, %v945
        %964 = vst.msk [vmem:[%s956 + $0x70] sm:$0xff] %vm343, %v947
        %965 = vrot.lane.b32.xlu0 %v303, 80
        %v966 = vpop.permute.xlu0 %965
        %967 = vrot.lane.b32.xlu0 %v308, 80
        %v968 = vpop.permute.xlu0 %967
        %969 = vrot.lane.b32.xlu0 %v313, 80
        %v970 = vpop.permute.xlu0 %969
        %971 = vrot.lane.b32.xlu0 %v318, 80
        %v972 = vpop.permute.xlu0 %971
        %973 = vrot.lane.b32.xlu0 %v323, 80
        %v974 = vpop.permute.xlu0 %973
        %975 = vrot.lane.b32.xlu0 %v328, 80
        %v976 = vpop.permute.xlu0 %975
        %977 = vrot.lane.b32.xlu0 %v333, 80
        %v978 = vpop.permute.xlu0 %977
        %979 = vrot.lane.b32.xlu0 %v338, 80
        %v980 = vpop.permute.xlu0 %979
        %v989 = vsel %vm343, %v966, 0.0
        %990 = vadd.xlane.f32.xlu0 %v989
        %v991 = vpop.xlane.xlu0 %990
        %v992 = vsel %vm343, %v968, 0.0
        %993 = vadd.xlane.f32.xlu0 %v992
        %v994 = vpop.xlane.xlu0 %993
        %v995 = vsel %vm343, %v970, 0.0
        %996 = vadd.xlane.f32.xlu0 %v995
        %v997 = vpop.xlane.xlu0 %996
        %v998 = vsel %vm343, %v972, 0.0
        %999 = vadd.xlane.f32.xlu0 %v998
        %v1000 = vpop.xlane.xlu0 %999
        %v1001 = vsel %vm343, %v974, 0.0
        %1002 = vadd.xlane.f32.xlu0 %v1001
        %v1003 = vpop.xlane.xlu0 %1002
        %v1004 = vsel %vm343, %v976, 0.0
        %1005 = vadd.xlane.f32.xlu0 %v1004
        %v1006 = vpop.xlane.xlu0 %1005
        %v1007 = vsel %vm343, %v978, 0.0
        %1008 = vadd.xlane.f32.xlu0 %v1007
        %v1009 = vpop.xlane.xlu0 %1008
        %v1010 = vsel %vm343, %v980, 0.0
        %1011 = vadd.xlane.f32.xlu0 %v1010
        %v1012 = vpop.xlane.xlu0 %1011
        %v1013 = vmul.f32 %v991, %v368
        %v1014 = vmul.f32 %v994, %v368
        %v1015 = vmul.f32 %v997, %v368
        %v1016 = vmul.f32 %v1000, %v368
        %v1017 = vmul.f32 %v1003, %v368
        %v1018 = vmul.f32 %v1006, %v368
        %v1019 = vmul.f32 %v1009, %v368
        %v1020 = vmul.f32 %v1012, %v368
        %v1021 = vsub.f32 %v303, %v1013
        %v1022 = vsub.f32 %v308, %v1014
        %v1023 = vsub.f32 %v313, %v1015
        %v1024 = vsub.f32 %v318, %v1016
        %v1025 = vsub.f32 %v323, %v1017
        %v1026 = vsub.f32 %v328, %v1018
        %v1027 = vsub.f32 %v333, %v1019
        %v1028 = vsub.f32 %v338, %v1020
        %v1029 = vmul.f32 %v1021, %v1021
        %v1030 = vmul.f32 %v1022, %v1022
        %v1031 = vmul.f32 %v1023, %v1023
        %v1032 = vmul.f32 %v1024, %v1024
        %v1033 = vmul.f32 %v1025, %v1025
        %v1034 = vmul.f32 %v1026, %v1026
        %v1035 = vmul.f32 %v1027, %v1027
        %v1036 = vmul.f32 %v1028, %v1028
        %1045 = vrot.lane.b32.xlu0 %v1029, 80
        %v1046 = vpop.permute.xlu0 %1045
        %1047 = vrot.lane.b32.xlu0 %v1030, 80
        %v1048 = vpop.permute.xlu0 %1047
        %1049 = vrot.lane.b32.xlu0 %v1031, 80
        %v1050 = vpop.permute.xlu0 %1049
        %1051 = vrot.lane.b32.xlu0 %v1032, 80
        %v1052 = vpop.permute.xlu0 %1051
        %1053 = vrot.lane.b32.xlu0 %v1033, 80
        %v1054 = vpop.permute.xlu0 %1053
        %1055 = vrot.lane.b32.xlu0 %v1034, 80
        %v1056 = vpop.permute.xlu0 %1055
        %1057 = vrot.lane.b32.xlu0 %v1035, 80
        %v1058 = vpop.permute.xlu0 %1057
        %1059 = vrot.lane.b32.xlu0 %v1036, 80
        %v1060 = vpop.permute.xlu0 %1059
        %v1069 = vsel %vm343, %v1046, 0.0
        %1070 = vadd.xlane.f32.xlu0 %v1069
        %v1071 = vpop.xlane.xlu0 %1070
        %v1072 = vsel %vm343, %v1048, 0.0
        %1073 = vadd.xlane.f32.xlu0 %v1072
        %v1074 = vpop.xlane.xlu0 %1073
        %v1075 = vsel %vm343, %v1050, 0.0
        %1076 = vadd.xlane.f32.xlu0 %v1075
        %v1077 = vpop.xlane.xlu0 %1076
        %v1078 = vsel %vm343, %v1052, 0.0
        %1079 = vadd.xlane.f32.xlu0 %v1078
        %v1080 = vpop.xlane.xlu0 %1079
        %v1081 = vsel %vm343, %v1054, 0.0
        %1082 = vadd.xlane.f32.xlu0 %v1081
        %v1083 = vpop.xlane.xlu0 %1082
        %v1084 = vsel %vm343, %v1056, 0.0
        %1085 = vadd.xlane.f32.xlu0 %v1084
        %v1086 = vpop.xlane.xlu0 %1085
        %v1087 = vsel %vm343, %v1058, 0.0
        %1088 = vadd.xlane.f32.xlu0 %v1087
        %v1089 = vpop.xlane.xlu0 %1088
        %v1090 = vsel %vm343, %v1060, 0.0
        %1091 = vadd.xlane.f32.xlu0 %v1090
        %v1092 = vpop.xlane.xlu0 %1091
        %v1093 = vmul.f32 %v1071, %v368
        %v1094 = vmul.f32 %v1074, %v368
        %v1095 = vmul.f32 %v1077, %v368
        %v1096 = vmul.f32 %v1080, %v368
        %v1097 = vmul.f32 %v1083, %v368
        %v1098 = vmul.f32 %v1086, %v368
        %v1099 = vmul.f32 %v1089, %v368
        %v1100 = vmul.f32 %v1092, %v368
        %v1101 = vadd.f32 %v1093, 1e-05
        %v1102 = vadd.f32 %v1094, 1e-05
        %v1103 = vadd.f32 %v1095, 1e-05
        %v1104 = vadd.f32 %v1096, 1e-05
        %v1105 = vadd.f32 %v1097, 1e-05
        %v1106 = vadd.f32 %v1098, 1e-05
        %v1107 = vadd.f32 %v1099, 1e-05
        %v1108 = vadd.f32 %v1100, 1e-05
        %v1109 = vrsqrt.pop %v1101
        %v1110 = vrsqrt.pop %v1102
        %v1111 = vrsqrt.pop %v1103
        %v1112 = vrsqrt.pop %v1104
        %v1113 = vrsqrt.pop %v1105
        %v1114 = vrsqrt.pop %v1106
        %v1115 = vrsqrt.pop %v1107
        %v1116 = vrsqrt.pop %v1108
        %v1117 = vmul.f32 %v1109, %v445
        %v1118 = vmul.f32 %v1110, %v445
        %v1119 = vmul.f32 %v1111, %v445
        %v1120 = vmul.f32 %v1112, %v445
        %v1121 = vmul.f32 %v1113, %v445
        %v1122 = vmul.f32 %v1114, %v445
        %v1123 = vmul.f32 %v1115, %v445
        %v1124 = vmul.f32 %v1116, %v445
        %1133 = vrot.lane.b32.xlu0 %v1117, 48
        %v1134 = vpop.permute.xlu0 %1133
        %1135 = vrot.lane.b32.xlu0 %v1118, 48
        %v1136 = vpop.permute.xlu0 %1135
        %1137 = vrot.lane.b32.xlu0 %v1119, 48
        %v1138 = vpop.permute.xlu0 %1137
        %1139 = vrot.lane.b32.xlu0 %v1120, 48
        %v1140 = vpop.permute.xlu0 %1139
        %1141 = vrot.lane.b32.xlu0 %v1121, 48
        %v1142 = vpop.permute.xlu0 %1141
        %1143 = vrot.lane.b32.xlu0 %v1122, 48
        %v1144 = vpop.permute.xlu0 %1143
        %1145 = vrot.lane.b32.xlu0 %v1123, 48
        %v1146 = vpop.permute.xlu0 %1145
        %1147 = vrot.lane.b32.xlu0 %v1124, 48
        %v1148 = vpop.permute.xlu0 %1147
        %v1157 = vmul.f32 %v1021, %v1134
        %v1158 = vmul.f32 %v1022, %v1136
        %v1159 = vmul.f32 %v1023, %v1138
        %v1160 = vmul.f32 %v1024, %v1140
        %v1161 = vmul.f32 %v1025, %v1142
        %v1162 = vmul.f32 %v1026, %v1144
        %v1163 = vmul.f32 %v1027, %v1146
        %v1164 = vmul.f32 %v1028, %v1148
        %1165 = vrot.lane.b32.xlu0 %v467, 48
        %v1166 = vpop.permute.xlu0 %1165
        %v1168 = vadd.f32 %v1157, %v1166
        %v1169 = vadd.f32 %v1158, %v1166
        %v1170 = vadd.f32 %v1159, %v1166
        %v1171 = vadd.f32 %v1160, %v1166
        %v1172 = vadd.f32 %v1161, %v1166
        %v1173 = vadd.f32 %v1162, %v1166
        %v1174 = vadd.f32 %v1163, %v1166
        %v1175 = vadd.f32 %v1164, %v1166
        %1184 = vrot.lane.b32.xlu0 %v1168, 96
        %v1185 = vpop.permute.xlu0 %1184
        %1186 = vrot.lane.b32.xlu0 %v1169, 96
        %v1187 = vpop.permute.xlu0 %1186
        %1188 = vrot.lane.b32.xlu0 %v1170, 96
        %v1189 = vpop.permute.xlu0 %1188
        %1190 = vrot.lane.b32.xlu0 %v1171, 96
        %v1191 = vpop.permute.xlu0 %1190
        %1192 = vrot.lane.b32.xlu0 %v1172, 96
        %v1193 = vpop.permute.xlu0 %1192
        %1194 = vrot.lane.b32.xlu0 %v1173, 96
        %v1195 = vpop.permute.xlu0 %1194
        %1196 = vrot.lane.b32.xlu0 %v1174, 96
        %v1197 = vpop.permute.xlu0 %1196
        %1198 = vrot.lane.b32.xlu0 %v1175, 96
        %v1199 = vpop.permute.xlu0 %1198
        %1208 = vst.msk [vmem:[%s956] sm:$0xff] %vm704, %v1185
        %1209 = vst.msk [vmem:[%s956 + $0x10] sm:$0xff] %vm704, %v1187
        %1210 = vst.msk [vmem:[%s956 + $0x20] sm:$0xff] %vm704, %v1189
        %1211 = vst.msk [vmem:[%s956 + $0x30] sm:$0xff] %vm704, %v1191
        %1212 = vst.msk [vmem:[%s956 + $0x40] sm:$0xff] %vm704, %v1193
        %1213 = vst.msk [vmem:[%s956 + $0x50] sm:$0xff] %vm704, %v1195
        %1214 = vst.msk [vmem:[%s956 + $0x60] sm:$0xff] %vm704, %v1197
        %1215 = vst.msk [vmem:[%s956 + $0x70] sm:$0xff] %vm704, %v1199
        %s1216 = sand.u32 %s115, 1
        %s1217 = scalar_lea.sflag [#allocation3], %s1216
        %s1218 = sand.u32 %s115, 1
        %s1219 = smul.addr %s1218, 128
        %s1220 = scalar_lea.vmem [#allocation2], %s1219
        // Predicated region
        $region37: #{tpu_custom_call.1} parent=35 // pred_check
          %p1221 = pneg %p125
        $region38: #{tpu_custom_call.1} parent=35 // pred_check_branch
          %1223 = sbr.rel (%p1221) target = $region40
        $region39: #{tpu_custom_call.1} parent=35 // pred_region
          %s1224 = smul.u32 8, %s18
          %s1226 = ssub.s32 2048, 2048
          %1227 = vsyncadd %s1217, %s1226
          %s1228 = smul.addr %s1224, 2
          %s1229 = smul.addr %s1228, 128
          %s1230 = scalar_lea.hbm %s4, %s1229
          %s1231 = sshll.u32 %s1220, 4
          %s1232 = int_to_ptr.vmem [resolvable:$true] %s1231
          %1237 = dma.vmem_to_hbm [thread:$0]  %s1232, 2048, %s1230, %s1217, 128, 128, 8
        $region40: #{tpu_custom_call.1} parent=35 // pred_fallthru
          _
      $region36: #{tpu_custom_call.1} parent=5 // pred_fallthru
        _
      %p1238 = scmp.le.s32.totalorder 2, %s13
      // Predicated region
      $region41: #{tpu_custom_call.1} parent=5 // pred_check
        %p1239 = pneg %p1238
      $region42: #{tpu_custom_call.1} parent=5 // pred_check_branch
        %1241 = sbr.rel (%p1239) target = $region44
      $region43: #{tpu_custom_call.1} parent=5 // pred_region
        %s1242 = ssub.s32 %s13, 2
        // Predicated region
        $region45: #{tpu_custom_call.1} parent=43 // pred_check
          %p1243 = pneg %p131
        $region46: #{tpu_custom_call.1} parent=43 // pred_check_branch
          %1245 = sbr.rel (%p1243) target = $region48
        $region47: #{tpu_custom_call.1} parent=43 // pred_region
          %s1246 = sand.u32 %s116, 1
          %s1247 = scalar_lea.sflag [#allocation3], %s1246
          %s1248 = sand.u32 %s116, 1
          %s1249 = smul.addr %s1248, 128
          %s1250 = scalar_lea.vmem [#allocation2], %s1249
          %1251 = dma.done %s1247, 2048
        $region48: #{tpu_custom_call.1} parent=43 // pred_fallthru
          _
      $region44: #{tpu_custom_call.1} parent=5 // pred_fallthru
        _
    $region6: #{tpu_custom_call.1} parent=1 // loop_footer
      %s17 = sadd.s32 1, %s13
    $region7: #{tpu_custom_call.1} parent=1 // loop_footer_branch
      %12 = sbr.rel target = $region3
    $region8: #{tpu_custom_call.1} parent=1 // loop_exit
      _
    %1252 = vsyncpa [#allocation3], 1
    %s1253 = scalar_lea.sflag [#allocation3], 1
    %1254 = vsyncpa %s1253, 1

</llo_original>
